<compile_context>
chip_gen: v7x
topology: tpu7x:2x2x1
jax: 0.10.0
libtpu: 0.0.40
codegen_flags: <defaults>
</compile_context>

<pallas_src>
import jax
import jax.numpy as jnp
from jax.experimental import pallas as pl
from jax.experimental.pallas import tpu as pltpu

HIDDEN = 64


def _round_up(x, m):
    return ((x + m - 1) // m) * m


def critic_kernel(x_ref, w1_ref, b1_ref, w2_ref, b2_ref, w3_ref, b3_ref, o_ref):
    # x_ref  : (TB, S)    f32   state tile (streamed per grid step, double-buffered)
    # w1_ref : (S, 64)    bf16  resident        b1_ref : (1, 64) f32 resident
    # w2_ref : (64, 64)   bf16  resident        b2_ref : (1, 64) f32 resident
    # w3_ref : (8, 64)    bf16  resident (row 0 = value-head weights, rows 1..7 zero)
    # b3_ref : (1, 1)     f32   SMEM scalar
    # o_ref  : (1, 1, TB) f32   lane-dense output slab for this batch tile
    x = x_ref[...].astype(jnp.bfloat16)

    h1 = jnp.dot(x, w1_ref[...], preferred_element_type=jnp.float32) + b1_ref[...]
    h1 = jnp.maximum(h1, 0.0).astype(jnp.bfloat16)

    h2 = jnp.dot(h1, w2_ref[...], preferred_element_type=jnp.float32) + b2_ref[...]
    h2 = jnp.maximum(h2, 0.0).astype(jnp.bfloat16)

    # Value head: contract the hidden dim of w3_rows against h2's last axis
    # (== pl.dot(w3_rows, h2, trans_b=True)) so per-row values come out lane-major
    # (rows -> lanes) as (8, TB).  Avoids an N=1 MXU matmul whose (TB, 1) result
    # would force masked partial stores.  If a bundle dump ever shows a full h2
    # XLU transpose here, restructure to jnp.dot(h2, w3_cols) + (TB,8)->(8,TB).
    vt = jax.lax.dot_general(
        w3_ref[...], h2,
        dimension_numbers=(((1,), (1,)), ((), ())),
        preferred_element_type=jnp.float32,
    )  # (8, TB); only row 0 is meaningful.
    o_ref[0] = (vt[0:1, :] + b3_ref[0, 0]).astype(o_ref.dtype)


def _critic_call(x, nb, TB, w1_bf, b1_r, w2_bf, b2_r, w3_rows, b3_r, *, core_parallel):
    """One pallas_call over `nb` batch tiles of `TB` rows each (x has >= nb*TB rows)."""
    S = x.shape[1]
    H = w1_bf.shape[1]

    weight_bytes = ((w1_bf.size + w2_bf.size + w3_rows.size) * 2
                    + (b1_r.size + b2_r.size + b3_r.size) * 4)
    flops = 2 * nb * TB * (S * H + H * H + H)
    bytes_accessed = nb * TB * S * 4 + nb * TB * 4 + weight_bytes

    # VMEM budget with lane-padded shapes: a (TB, S) f32 block occupies TB*128*4 B
    # (minor dim padded 16->128); the (1,1,TB) output block pads sublanes 1->8.
    # Both are double-buffered by the pipeliner.  Only raise the scoped limit when a
    # big TB actually needs it (default scoped limit: 16 MiB v5e / 32 MiB v6e,v7x).
    vmem_needed = 2 * (TB * 128 * 4 + 8 * TB * 4) + weight_bytes + (2 << 20)
    vmem_limit = None if vmem_needed <= (12 << 20) else min(vmem_needed, 48 << 20)

    batch_sem = pltpu.CORE_PARALLEL if core_parallel else pltpu.PARALLEL

    return pl.pallas_call(
        critic_kernel,
        out_shape=jax.ShapeDtypeStruct((nb, 1, TB), jnp.float32),
        grid_spec=pltpu.PrefetchScalarGridSpec(
            num_scalar_prefetch=0,
            grid=(nb,),
            in_specs=[
                pl.BlockSpec((TB, S), lambda i: (i, 0)),   # state tile (streamed)
                pl.BlockSpec((S, H), lambda i: (0, 0)),    # w1 (resident)
                pl.BlockSpec((1, H), lambda i: (0, 0)),    # b1 (resident)
                pl.BlockSpec((H, H), lambda i: (0, 0)),    # w2 (resident)
                pl.BlockSpec((1, H), lambda i: (0, 0)),    # b2 (resident)
                pl.BlockSpec((8, H), lambda i: (0, 0)),    # w3 rows (resident)
                pl.BlockSpec(memory_space=pltpu.MemorySpace.SMEM),  # b3 scalar
            ],
            out_specs=pl.BlockSpec((1, 1, TB), lambda i: (i, 0, 0)),
        ),
        compiler_params=pltpu.CompilerParams(
            dimension_semantics=(batch_sem,),
            vmem_limit_bytes=vmem_limit,
        ),
        cost_estimate=pl.CostEstimate(
            flops=flops, transcendentals=0, bytes_accessed=bytes_accessed),
    )(x, w1_bf, b1_r, w2_bf, b2_r, w3_rows, b3_r)


def critic_forward(state, params, *, block_rows=4096, core_parallel=False):
    """state: (B, state_dim) f32 -> (B, 1) f32 value estimates.

    block_rows: batch tile (rounded up to a multiple of 128).  Sweep 2048-8192;
      on v5e keep <= 4096 unless you also raise the scoped VMEM limit.
    core_parallel: set True on v7x so batch tiles split across both TensorCores;
      leave False on single-TensorCore v5e/v6e.
    """
    w1, b1, w2, b2, w3, b3 = params
    B, S = state.shape
    H = w1.shape[1]

    # Tile must be a multiple of 128: keeps the (1,1,TB) output an unmasked
    # lane-dense store and the (TB, S) block within the (8,128) rule.
    TB = max(128, _round_up(int(block_rows), 128))

    # Weights resident in VMEM as bf16 (halves resident bytes, feeds MXU); biases f32.
    w1_bf = w1.astype(jnp.bfloat16)
    w2_bf = w2.astype(jnp.bfloat16)
    w3_rows = jnp.pad(w3.reshape(1, H), ((0, 7), (0, 0))).astype(jnp.bfloat16)  # (8, H)
    b1_r = b1.reshape(1, H).astype(jnp.float32)
    b2_r = b2.reshape(1, H).astype(jnp.float32)
    b3_r = b3.reshape(1, 1).astype(jnp.float32)
    ws = (w1_bf, b1_r, w2_bf, b2_r, w3_rows, b3_r)

    n_full = B // TB
    rem = B - n_full * TB

    pieces = []
    if n_full > 0:
        # Full tiles run directly on the unpadded array; the grid never reads the tail.
        out_main = _critic_call(state, n_full, TB, *ws, core_parallel=core_parallel)
        pieces.append(out_main.reshape(n_full * TB))
    if rem > 0:
        # Ragged tail: pad ONLY the tail rows (not the whole array) to one small tile.
        TB_t = max(128, _round_up(rem, 128))
        tail = jnp.pad(state[n_full * TB:], ((0, TB_t - rem), (0, 0)))
        out_tail = _critic_call(tail, 1, TB_t, *ws, core_parallel=False)
        pieces.append(out_tail.reshape(TB_t)[:rem])

    v = pieces[0] if len(pieces) == 1 else jnp.concatenate(pieces)
    return v.reshape(B, 1)


def init_params(key, state_dim):
    """Deterministic init matching PyTorch nn.Linear shapes (stored transposed)."""
    ks = jax.random.split(key, 6)

    def linear_init(kw, kb, fan_in, fan_out):
        bound = 1.0 / jnp.sqrt(fan_in)
        w = jax.random.uniform(kw, (fan_in, fan_out), jnp.float32, -bound, bound)
        b = jax.random.uniform(kb, (1, fan_out), jnp.float32, -bound, bound)
        return w, b

    w1, b1 = linear_init(ks[0], ks[1], state_dim, HIDDEN)
    w2, b2 = linear_init(ks[2], ks[3], HIDDEN, HIDDEN)
    w3, b3 = linear_init(ks[4], ks[5], HIDDEN, 1)
    return (w1, b1, w2, b2, w3, b3)


def reference_forward_bf16(state, params):
    """Plain-JAX reference mirroring the kernel's bf16-input / f32-accumulate math."""
    w1, b1, w2, b2, w3, b3 = params
    h1 = jnp.maximum(
        jnp.dot(state.astype(jnp.bfloat16), w1.astype(jnp.bfloat16),
                preferred_element_type=jnp.float32) + b1, 0.0).astype(jnp.bfloat16)
    h2 = jnp.maximum(
        jnp.dot(h1, w2.astype(jnp.bfloat16),
                preferred_element_type=jnp.float32) + b2, 0.0).astype(jnp.bfloat16)
    return jnp.dot(h2, w3.astype(jnp.bfloat16),
                   preferred_element_type=jnp.float32) + b3


def reference_forward_f32(state, params):
    """Reference matching the PyTorch module's f32 math."""
    w1, b1, w2, b2, w3, b3 = params
    h1 = jnp.maximum(state @ w1 + b1, 0.0)
    h2 = jnp.maximum(h1 @ w2 + b2, 0.0)
    return h2 @ w3 + b3


if __name__ == "__main__":
    key = jax.random.PRNGKey(0)
    k_state, k_params, k_state2, k_state3 = jax.random.split(key, 4)

    batch, state_dim = 8, 16
    state = jax.random.normal(k_state, (batch, state_dim), dtype=jnp.float32)
    params = init_params(k_params, state_dim)

    # Small batch -> single padded 128-row tail tile.
    v = jax.block_until_ready(critic_forward(state, params))
    assert v.shape == (batch, 1)
    assert jnp.allclose(v, reference_forward_bf16(state, params), atol=1e-3, rtol=1e-3)
    assert jnp.allclose(v, reference_forward_f32(state, params), atol=5e-2, rtol=5e-2)

    # Ragged batch: 2 full 128-row tiles on the unpadded array + a 44-row padded tail
    # (exercises grid > 1, resident weights, the separate tail call, and the concat).
    batch2 = 300
    state2 = jax.random.normal(k_state2, (batch2, state_dim), dtype=jnp.float32)
    v2 = jax.block_until_ready(critic_forward(state2, params, block_rows=128))
    assert v2.shape == (batch2, 1)
    assert jnp.allclose(v2, reference_forward_bf16(state2, params), atol=1e-3, rtol=1e-3)

    # Exact multiple of the tile: no tail call at all.
    batch3 = 256
    state3 = jax.random.normal(k_state3, (batch3, state_dim), dtype=jnp.float32)
    v3 = jax.block_until_ready(critic_forward(state3, params, block_rows=128))
    assert v3.shape == (batch3, 1)
    assert jnp.allclose(v3, reference_forward_bf16(state3, params), atol=1e-3, rtol=1e-3)

    print("KERNEL_OK")
</pallas_src>

<mosaic_0001>
module attributes {stable_mosaic.version = 11 : i64} {
  func.func @critic_kernel(%arg0: i32, %arg1: memref<128x16xf32, #tpu.memory_space<vmem>>, %arg2: memref<16x64xbf16, #tpu.memory_space<vmem>>, %arg3: memref<1x64xf32, #tpu.memory_space<vmem>>, %arg4: memref<64x64xbf16, #tpu.memory_space<vmem>>, %arg5: memref<1x64xf32, #tpu.memory_space<vmem>>, %arg6: memref<8x64xbf16, #tpu.memory_space<vmem>>, %arg7: memref<1x1xf32, #tpu.memory_space<smem>>, %arg8: memref<1x1x128xf32, #tpu.memory_space<vmem>>) attributes {dimension_semantics = [#tpu.dimension_semantics<parallel>], iteration_bounds = array<i64: 1>, scalar_prefetch = 0 : i64, scratch_operands = 0 : i64, tpu.core_type = #tpu.core_type<tc>, window_params = [{transform_indices = @transform_0, window_bounds = array<i64: 128, 16>}, {pipeline_mode = #tpu.pipeline_mode<synchronous>, transform_indices = @transform_1, window_bounds = array<i64: 16, 64>}, {pipeline_mode = #tpu.pipeline_mode<synchronous>, transform_indices = @transform_2, window_bounds = array<i64: 1, 64>}, {pipeline_mode = #tpu.pipeline_mode<synchronous>, transform_indices = @transform_3, window_bounds = array<i64: 64, 64>}, {pipeline_mode = #tpu.pipeline_mode<synchronous>, transform_indices = @transform_4, window_bounds = array<i64: 1, 64>}, {pipeline_mode = #tpu.pipeline_mode<synchronous>, transform_indices = @transform_5, window_bounds = array<i64: 8, 64>}, {transform_indices = @transform_6, window_bounds = array<i64: 1, 1>}, {transform_indices = @transform_7, window_bounds = array<i64: 1, 1, 128>}]} {
    %c0 = arith.constant 0 : index
    %c0_0 = arith.constant 0 : index
    %0 = vector.load %arg1[%c0, %c0_0] : memref<128x16xf32, #tpu.memory_space<vmem>>, vector<128x16xf32>
    %1 = arith.truncf %0 : vector<128x16xf32> to vector<128x16xbf16>
    %c0_1 = arith.constant 0 : index
    %c0_2 = arith.constant 0 : index
    %2 = vector.load %arg2[%c0_1, %c0_2] : memref<16x64xbf16, #tpu.memory_space<vmem>>, vector<16x64xbf16>
    %cst = arith.constant dense<0.000000e+00> : vector<128x64xf32>
    %3 = tpu.matmul %1, %2, %cst {dimension_numbers = #tpu.dot_dimension_numbers<[1], [0], [0], [1], [0, 0, 1, 1], [], []>} : vector<128x16xbf16>, vector<16x64xbf16>, vector<128x64xf32> -> vector<128x64xf32>
    %c0_3 = arith.constant 0 : index
    %c0_4 = arith.constant 0 : index
    %4 = vector.load %arg3[%c0_3, %c0_4] : memref<1x64xf32, #tpu.memory_space<vmem>>, vector<1x64xf32>
    %5 = vector.broadcast %4 : vector<1x64xf32> to vector<128x64xf32>
    %6 = arith.addf %3, %5 : vector<128x64xf32>
    %cst_5 = arith.constant 0.000000e+00 : f32
    %7 = vector.broadcast %cst_5 : f32 to vector<128x64xf32>
    %8 = arith.maximumf %6, %7 : vector<128x64xf32>
    %9 = arith.truncf %8 : vector<128x64xf32> to vector<128x64xbf16>
    %c0_6 = arith.constant 0 : index
    %c0_7 = arith.constant 0 : index
    %10 = vector.load %arg4[%c0_6, %c0_7] : memref<64x64xbf16, #tpu.memory_space<vmem>>, vector<64x64xbf16>
    %cst_8 = arith.constant dense<0.000000e+00> : vector<128x64xf32>
    %11 = tpu.matmul %9, %10, %cst_8 {dimension_numbers = #tpu.dot_dimension_numbers<[1], [0], [0], [1], [0, 0, 1, 1], [], []>} : vector<128x64xbf16>, vector<64x64xbf16>, vector<128x64xf32> -> vector<128x64xf32>
    %c0_9 = arith.constant 0 : index
    %c0_10 = arith.constant 0 : index
    %12 = vector.load %arg5[%c0_9, %c0_10] : memref<1x64xf32, #tpu.memory_space<vmem>>, vector<1x64xf32>
    %13 = vector.broadcast %12 : vector<1x64xf32> to vector<128x64xf32>
    %14 = arith.addf %11, %13 : vector<128x64xf32>
    %cst_11 = arith.constant 0.000000e+00 : f32
    %15 = vector.broadcast %cst_11 : f32 to vector<128x64xf32>
    %16 = arith.maximumf %14, %15 : vector<128x64xf32>
    %17 = arith.truncf %16 : vector<128x64xf32> to vector<128x64xbf16>
    %c0_12 = arith.constant 0 : index
    %c0_13 = arith.constant 0 : index
    %18 = vector.load %arg6[%c0_12, %c0_13] : memref<8x64xbf16, #tpu.memory_space<vmem>>, vector<8x64xbf16>
    %cst_14 = arith.constant dense<0.000000e+00> : vector<8x128xf32>
    %19 = tpu.matmul %18, %17, %cst_14 {dimension_numbers = #tpu.dot_dimension_numbers<[1], [1], [0], [0], [0, 0, 1, 0], [], []>} : vector<8x64xbf16>, vector<128x64xbf16>, vector<8x128xf32> -> vector<8x128xf32>
    %20 = vector.extract_strided_slice %19 {offsets = [0, 0], sizes = [1, 128], strides = [1, 1]} : vector<8x128xf32> to vector<1x128xf32>
    %c0_15 = arith.constant 0 : index
    %c0_16 = arith.constant 0 : index
    %21 = memref.load %arg7[%c0_15, %c0_16] : memref<1x1xf32, #tpu.memory_space<smem>>
    %22 = vector.broadcast %21 : f32 to vector<1x128xf32>
    %23 = arith.addf %20, %22 : vector<1x128xf32>
    %c0_17 = arith.constant 0 : index
    %c0_18 = arith.constant 0 : index
    %c0_19 = arith.constant 0 : index
    %24 = vector.load %arg8[%c0_17, %c0_18, %c0_19] : memref<1x1x128xf32, #tpu.memory_space<vmem>>, vector<1x1x128xf32>
    %25 = vector.shape_cast %24 : vector<1x1x128xf32> to vector<1x128xf32>
    %26 = vector.shape_cast %23 : vector<1x128xf32> to vector<1x1x128xf32>
    tpu.vector_store %arg8[%c0_17, %c0_18, %c0_19], %26 {strides = array<i32>} : memref<1x1x128xf32, #tpu.memory_space<vmem>>, vector<1x1x128xf32>,
    return
  }
  func.func @transform_0(%arg0: i32) -> (i32, i32) {
    %c0_i32 = arith.constant 0 : i32
    %c0_i32_0 = arith.constant 0 : i32
    return %arg0, %c0_i32 : i32, i32
  }
  func.func @transform_1(%arg0: i32) -> (i32, i32) {
    %c0_i32 = arith.constant 0 : i32
    %c0_i32_0 = arith.constant 0 : i32
    %c0_i32_1 = arith.constant 0 : i32
    return %c0_i32, %c0_i32_0 : i32, i32
  }
  func.func @transform_2(%arg0: i32) -> (i32, i32) {
    %c0_i32 = arith.constant 0 : i32
    %c0_i32_0 = arith.constant 0 : i32
    %c0_i32_1 = arith.constant 0 : i32
    return %c0_i32, %c0_i32_0 : i32, i32
  }
  func.func @transform_3(%arg0: i32) -> (i32, i32) {
    %c0_i32 = arith.constant 0 : i32
    %c0_i32_0 = arith.constant 0 : i32
    %c0_i32_1 = arith.constant 0 : i32
    return %c0_i32, %c0_i32_0 : i32, i32
  }
  func.func @transform_4(%arg0: i32) -> (i32, i32) {
    %c0_i32 = arith.constant 0 : i32
    %c0_i32_0 = arith.constant 0 : i32
    %c0_i32_1 = arith.constant 0 : i32
    return %c0_i32, %c0_i32_0 : i32, i32
  }
  func.func @transform_5(%arg0: i32) -> (i32, i32) {
    %c0_i32 = arith.constant 0 : i32
    %c0_i32_0 = arith.constant 0 : i32
    %c0_i32_1 = arith.constant 0 : i32
    return %c0_i32, %c0_i32_0 : i32, i32
  }
  func.func @transform_6(%arg0: i32) -> (i32, i32) {
    %c0_i32 = arith.constant 0 : i32
    %c0_i32_0 = arith.constant 0 : i32
    %c0_i32_1 = arith.constant 0 : i32
    return %c0_i32, %c0_i32_0 : i32, i32
  }
  func.func @transform_7(%arg0: i32) -> (i32, i32, i32) {
    %c0_i32 = arith.constant 0 : i32
    %c0_i32_0 = arith.constant 0 : i32
    %c0_i32_1 = arith.constant 0 : i32
    return %arg0, %c0_i32, %c0_i32_0 : i32, i32, i32
  }
}

</mosaic_0001>

<llo_original>
// kernel: tpu_custom_call.1
$region0: #{tpu_custom_call.1}
  #allocation0 [shape = 'u32[]', space=smem, size = 0x4, offset = 0x4, fixed_abs, tag = 'smem constant byte address 0x4 - core index']
  #allocation1 [shape = 'u32[144,128]{1,0:T(1,128)}', space=vmem, size = 0x12000, scoped, tag = 'internal scratch']
  #allocation2 [shape = 'f32[1,1]{1,0:T(1,128)S(6)}', space=smem, size = 0x200, scoped, tag = 'scoped memory for tpu_custom_call.1']
  %s0 = inlined_call_operand.vmem [shape: f32[128,16], index: 0, kind: input, shape index: {}]
  %s1 = inlined_call_operand.vmem [shape: bf16[16,64], index: 1, kind: input, shape index: {}]
  %s2 = inlined_call_operand.vmem [shape: f32[1,64], index: 2, kind: input, shape index: {}]
  %s3 = inlined_call_operand.vmem [shape: bf16[64,64], index: 3, kind: input, shape index: {}]
  %s4 = inlined_call_operand.vmem [shape: f32[1,64], index: 4, kind: input, shape index: {}]
  %s5 = inlined_call_operand.vmem [shape: bf16[8,64], index: 5, kind: input, shape index: {}]
  %s6 = inlined_call_operand.<no memory space> [shape: f32[1,1], index: 6, kind: input, shape index: {}]
  %s7 = inlined_call_operand.hbm [shape: f32[1,1,128], index: 7, kind: output, shape index: {}]
  %s8 = sld [smem:[#allocation0]]
  $region38: #{tpu_custom_call.1} parent=0
    _
  %s10 = ssub.s32 1, %s8
  %s11 = scalar_select 0, %s10, %s8
  %12 = sst [smem:[#allocation2]] %s6
  $region1: #{tpu_custom_call.1} parent=0
    #allocation3 [shape = 'u8[512]{0}', space=vmem, size = 0x400, scoped, tag = 'output window, operand 0, single buffered']
    #allocation4 [shape = 's32[1]{0}', space=sflag, size = 0x4, scoped, tag = 'scoped memory for tpu_custom_call.1']
    %13 = vsyncpa [#allocation4], 0
    // Predicated region
    $region2: #{tpu_custom_call.1} parent=1 // pred_check
      _
    $region3: #{tpu_custom_call.1} parent=1 // pred_check_branch
      %15 = sbr.rel (0) target = $region5
    $region4: #{tpu_custom_call.1} parent=1 // pred_region
      _
    $region5: #{tpu_custom_call.1} parent=1 // pred_fallthru
      _
    // Predicated region
    $region6: #{tpu_custom_call.1} parent=1 // pred_check
      _
    $region7: #{tpu_custom_call.1} parent=1 // pred_check_branch
      %17 = sbr.rel (0) target = $region9
    $region8: #{tpu_custom_call.1} parent=1 // pred_region
      _
    $region9: #{tpu_custom_call.1} parent=1 // pred_fallthru
      _
    // Predicated region
    $region10: #{tpu_custom_call.1} parent=1 // pred_check
      _
    $region11: #{tpu_custom_call.1} parent=1 // pred_check_branch
      %19 = sbr.rel (0) target = $region13
    $region12: #{tpu_custom_call.1} parent=1 // pred_region
      _
    $region13: #{tpu_custom_call.1} parent=1 // pred_fallthru
      _
    // Predicated region
    $region14: #{tpu_custom_call.1} parent=1 // pred_check
      _
    $region15: #{tpu_custom_call.1} parent=1 // pred_check_branch
      %21 = sbr.rel (0) target = $region17
    $region16: #{tpu_custom_call.1} parent=1 // pred_region
      _
    $region17: #{tpu_custom_call.1} parent=1 // pred_fallthru
      _
    // Predicated region
    $region18: #{tpu_custom_call.1} parent=1 // pred_check
      _
    $region19: #{tpu_custom_call.1} parent=1 // pred_check_branch
      %23 = sbr.rel (0) target = $region21
    $region20: #{tpu_custom_call.1} parent=1 // pred_region
      _
    $region21: #{tpu_custom_call.1} parent=1 // pred_fallthru
      _
    // Predicated region
    $region22: #{tpu_custom_call.1} parent=1 // pred_check
      _
    $region23: #{tpu_custom_call.1} parent=1 // pred_check_branch
      %25 = sbr.rel (0) target = $region25
    $region24: #{tpu_custom_call.1} parent=1 // pred_region
      _
    $region25: #{tpu_custom_call.1} parent=1 // pred_fallthru
      _
    // Predicated region
    $region26: #{tpu_custom_call.1} parent=1 // pred_check
      _
    $region27: #{tpu_custom_call.1} parent=1 // pred_check_branch
      %27 = sbr.rel (0) target = $region29
    $region28: #{tpu_custom_call.1} parent=1 // pred_region
      _
    $region29: #{tpu_custom_call.1} parent=1 // pred_fallthru
      _
    %v29 = vld [vmem:[%s0] sm:$0xff]
    %v30 = vld [vmem:[%s0 + $0x8] sm:$0xff]
    %v31 = vld [vmem:[%s0 + $0x10] sm:$0xff]
    %v32 = vld [vmem:[%s0 + $0x18] sm:$0xff]
    %v33 = vld [vmem:[%s0 + $0x20] sm:$0xff]
    %v34 = vld [vmem:[%s0 + $0x28] sm:$0xff]
    %v35 = vld [vmem:[%s0 + $0x30] sm:$0xff]
    %v36 = vld [vmem:[%s0 + $0x38] sm:$0xff]
    %v37 = vld [vmem:[%s0 + $0x40] sm:$0xff]
    %v38 = vld [vmem:[%s0 + $0x48] sm:$0xff]
    %v39 = vld [vmem:[%s0 + $0x50] sm:$0xff]
    %v40 = vld [vmem:[%s0 + $0x58] sm:$0xff]
    %v41 = vld [vmem:[%s0 + $0x60] sm:$0xff]
    %v42 = vld [vmem:[%s0 + $0x68] sm:$0xff]
    %v43 = vld [vmem:[%s0 + $0x70] sm:$0xff]
    %v44 = vld [vmem:[%s0 + $0x78] sm:$0xff]
    %v45 = vpack.c.bf16 %v30, %v29
    %v46 = vpack.c.bf16 %v32, %v31
    %v47 = vpack.c.bf16 %v34, %v33
    %v48 = vpack.c.bf16 %v36, %v35
    %v49 = vpack.c.bf16 %v38, %v37
    %v50 = vpack.c.bf16 %v40, %v39
    %v51 = vpack.c.bf16 %v42, %v41
    %v52 = vpack.c.bf16 %v44, %v43
    %v53 = vld [vmem:[%s1] sm:$0xf]
    %v54 = vld [vmem:[%s1 + $0x4] sm:$0xf]
    %v55 = vld [vmem:[%s2] sm:$0x1]
    %v57 = vlaneseq
    %v58 = vshrl.u32 %v57, 7
    %v59 = vsub.s32 0, %v58
    %v60 = vrot.slane %v55, %v59
    %v64 = vunpack.c.l.b16 %v53
    %v65 = vunpack.c.l.b16 %v54
    %v66 = vpack.c.b16 %v65, %v64
    %vm68 = vcmask 130048
    %v70 = vsel %vm68, %v45, 0
    %v73 = vsel %vm68, %v46, 0
    %v76 = vsel %vm68, %v47, 0
    %v79 = vsel %vm68, %v48, 0
    %v82 = vsel %vm68, %v49, 0
    %v85 = vsel %vm68, %v50, 0
    %v88 = vsel %vm68, %v51, 0
    %v91 = vsel %vm68, %v52, 0
    %93 = vmatprep.subr.bf16.mxu0 0
    %94 = vmatpush1.bf16.msra.mxu0 %v66
    %95 = vmatprep.subr.bf16.mxu0 0
    %96 = vmatpush1.bf16.msra.mxu0 0
    %97 = vmatprep.subr.bf16.mxu0 0
    %98 = vmatpush1.bf16.msra.mxu0 0
    %99 = vmatprep.subr.bf16.mxu0 0
    %100 = vmatpush1.bf16.msra.mxu0 0
    %101 = vmatprep.subr.bf16.mxu0 0
    %102 = vmatpush1.bf16.msra.mxu0 0
    %103 = vmatprep.subr.bf16.mxu0 0
    %104 = vmatpush1.bf16.msra.mxu0 0
    %105 = vmatprep.subr.bf16.mxu0 0
    %106 = vmatpush1.bf16.msra.mxu0 0
    %107 = vmatprep.subr.bf16.mxu0 0
    %108 = vmatpush1.bf16.msra.mxu0 0
    %109 = vmatprep.subr.bf16.mxu0 0
    %110 = vmatpush1.bf16.msra.mxu0 0
    %111 = vmatprep.subr.bf16.mxu0 0
    %112 = vmatpush1.bf16.msra.mxu0 0
    %113 = vmatprep.subr.bf16.mxu0 0
    %114 = vmatpush1.bf16.msra.mxu0 0
    %115 = vmatprep.subr.bf16.mxu0 0
    %116 = vmatpush1.bf16.msra.mxu0 0
    %117 = vmatprep.subr.bf16.mxu0 0
    %118 = vmatpush1.bf16.msra.mxu0 0
    %119 = vmatprep.subr.bf16.mxu0 0
    %120 = vmatpush1.bf16.msra.mxu0 0
    %121 = vmatprep.subr.bf16.mxu0 0
    %122 = vmatpush1.bf16.msra.mxu0 0
    %123 = vmatprep.subr.bf16.mxu0 0
    %124 = vmatpush1.bf16.msra.mxu0 0
    %125 = vmatprep.mubr.bf16.mxu0 0
    %126 = vmatmul.mubr.bf16.gmra.mrb[0].mxu0 %v70
    %v127 = vpop.f32.mrb[0].mxu0
    %v128 = vadd.f32 %v60, %v127
    %v129 = vpop.f32.mrb[0].mxu0
    %v130 = vpop.f32.mrb[0].mxu0
    %v131 = vadd.f32 %v60, %v130
    %v132 = vpop.f32.mrb[0].mxu0
    %133 = vmatprep.mubr.bf16.mxu0 0
    %134 = vmatmul.mubr.bf16.gmra.mrb[0].mxu0 %v73
    %v135 = vpop.f32.mrb[0].mxu0
    %v136 = vadd.f32 %v60, %v135
    %v137 = vpop.f32.mrb[0].mxu0
    %v138 = vpop.f32.mrb[0].mxu0
    %v139 = vadd.f32 %v60, %v138
    %v140 = vpop.f32.mrb[0].mxu0
    %141 = vmatprep.mubr.bf16.mxu0 0
    %142 = vmatmul.mubr.bf16.gmra.mrb[0].mxu0 %v76
    %v143 = vpop.f32.mrb[0].mxu0
    %v144 = vadd.f32 %v60, %v143
    %v145 = vpop.f32.mrb[0].mxu0
    %v146 = vpop.f32.mrb[0].mxu0
    %v147 = vadd.f32 %v60, %v146
    %v148 = vpop.f32.mrb[0].mxu0
    %149 = vmatprep.mubr.bf16.mxu0 0
    %150 = vmatmul.mubr.bf16.gmra.mrb[0].mxu0 %v79
    %v151 = vpop.f32.mrb[0].mxu0
    %v152 = vadd.f32 %v60, %v151
    %v153 = vpop.f32.mrb[0].mxu0
    %v154 = vpop.f32.mrb[0].mxu0
    %v155 = vadd.f32 %v60, %v154
    %v156 = vpop.f32.mrb[0].mxu0
    %157 = vmatprep.mubr.bf16.mxu0 0
    %158 = vmatmul.mubr.bf16.gmra.mrb[0].mxu0 %v82
    %v159 = vpop.f32.mrb[0].mxu0
    %v160 = vadd.f32 %v60, %v159
    %v161 = vpop.f32.mrb[0].mxu0
    %v162 = vpop.f32.mrb[0].mxu0
    %v163 = vadd.f32 %v60, %v162
    %v164 = vpop.f32.mrb[0].mxu0
    %165 = vmatprep.mubr.bf16.mxu0 0
    %166 = vmatmul.mubr.bf16.gmra.mrb[0].mxu0 %v85
    %v167 = vpop.f32.mrb[0].mxu0
    %v168 = vadd.f32 %v60, %v167
    %v169 = vpop.f32.mrb[0].mxu0
    %v170 = vpop.f32.mrb[0].mxu0
    %v171 = vadd.f32 %v60, %v170
    %v172 = vpop.f32.mrb[0].mxu0
    %173 = vmatprep.mubr.bf16.mxu0 0
    %174 = vmatmul.mubr.bf16.gmra.mrb[0].mxu0 %v88
    %v175 = vpop.f32.mrb[0].mxu0
    %v176 = vadd.f32 %v60, %v175
    %v177 = vpop.f32.mrb[0].mxu0
    %v178 = vpop.f32.mrb[0].mxu0
    %v179 = vadd.f32 %v60, %v178
    %v180 = vpop.f32.mrb[0].mxu0
    %181 = vmatprep.mubr.bf16.mxu0 0
    %182 = vmatmul.mubr.bf16.gmra.mrb[0].mxu0 %v91
    %v183 = vpop.f32.mrb[0].mxu0
    %v184 = vadd.f32 %v60, %v183
    %v185 = vpop.f32.mrb[0].mxu0
    %v186 = vpop.f32.mrb[0].mxu0
    %v187 = vadd.f32 %v60, %v186
    %v188 = vpop.f32.mrb[0].mxu0
    %189 = vdwg.mxu0
    %v190 = vmax.f32 %v128, 0.0
    %v191 = vmax.f32 %v131, 0.0
    %v192 = vmax.f32 %v136, 0.0
    %v193 = vmax.f32 %v139, 0.0
    %v194 = vmax.f32 %v144, 0.0
    %v195 = vmax.f32 %v147, 0.0
    %v196 = vmax.f32 %v152, 0.0
    %v197 = vmax.f32 %v155, 0.0
    %v198 = vmax.f32 %v160, 0.0
    %v199 = vmax.f32 %v163, 0.0
    %v200 = vmax.f32 %v168, 0.0
    %v201 = vmax.f32 %v171, 0.0
    %v202 = vmax.f32 %v176, 0.0
    %v203 = vmax.f32 %v179, 0.0
    %v204 = vmax.f32 %v184, 0.0
    %v205 = vmax.f32 %v187, 0.0
    %v206 = vpack.c.bf16 %v191, %v190
    %v207 = vpack.c.bf16 %v193, %v192
    %v208 = vpack.c.bf16 %v195, %v194
    %v209 = vpack.c.bf16 %v197, %v196
    %v210 = vpack.c.bf16 %v199, %v198
    %v211 = vpack.c.bf16 %v201, %v200
    %v212 = vpack.c.bf16 %v203, %v202
    %v213 = vpack.c.bf16 %v205, %v204
    %v214 = vld [vmem:[%s3] sm:$0xf]
    %v215 = vld [vmem:[%s3 + $0x4] sm:$0xf]
    %v216 = vld [vmem:[%s3 + $0x8] sm:$0xf]
    %v217 = vld [vmem:[%s3 + $0xc] sm:$0xf]
    %v218 = vld [vmem:[%s3 + $0x10] sm:$0xf]
    %v219 = vld [vmem:[%s3 + $0x14] sm:$0xf]
    %v220 = vld [vmem:[%s3 + $0x18] sm:$0xf]
    %v221 = vld [vmem:[%s3 + $0x1c] sm:$0xf]
    %v222 = vld [vmem:[%s4] sm:$0x1]
    %v224 = vlaneseq
    %v225 = vshrl.u32 %v224, 7
    %v226 = vsub.s32 0, %v225
    %v227 = vrot.slane %v222, %v226
    %v237 = vunpack.c.l.b16 %v214
    %v238 = vunpack.c.l.b16 %v215
    %v239 = vunpack.c.l.b16 %v216
    %v240 = vunpack.c.l.b16 %v217
    %v241 = vunpack.c.l.b16 %v218
    %v242 = vunpack.c.l.b16 %v219
    %v243 = vunpack.c.l.b16 %v220
    %v244 = vunpack.c.l.b16 %v221
    %v245 = vpack.c.b16 %v238, %v237
    %v246 = vpack.c.b16 %v240, %v239
    %v247 = vpack.c.b16 %v242, %v241
    %v248 = vpack.c.b16 %v244, %v243
    %vm253 = vcmask 523264
    %v255 = vsel %vm253, %v206, 0
    %v258 = vsel %vm253, %v207, 0
    %v261 = vsel %vm253, %v208, 0
    %v264 = vsel %vm253, %v209, 0
    %v267 = vsel %vm253, %v210, 0
    %v270 = vsel %vm253, %v211, 0
    %v273 = vsel %vm253, %v212, 0
    %v276 = vsel %vm253, %v213, 0
    %278 = vmatprep.subr.bf16.mxu0 0
    %279 = vmatpush1.bf16.msra.mxu0 %v245
    %280 = vmatprep.subr.bf16.mxu0 0
    %281 = vmatpush1.bf16.msra.mxu0 %v246
    %282 = vmatprep.subr.bf16.mxu0 0
    %283 = vmatpush1.bf16.msra.mxu0 %v247
    %284 = vmatprep.subr.bf16.mxu0 0
    %285 = vmatpush1.bf16.msra.mxu0 %v248
    %286 = vmatprep.subr.bf16.mxu0 0
    %287 = vmatpush1.bf16.msra.mxu0 0
    %288 = vmatprep.subr.bf16.mxu0 0
    %289 = vmatpush1.bf16.msra.mxu0 0
    %290 = vmatprep.subr.bf16.mxu0 0
    %291 = vmatpush1.bf16.msra.mxu0 0
    %292 = vmatprep.subr.bf16.mxu0 0
    %293 = vmatpush1.bf16.msra.mxu0 0
    %294 = vmatprep.subr.bf16.mxu0 0
    %295 = vmatpush1.bf16.msra.mxu0 0
    %296 = vmatprep.subr.bf16.mxu0 0
    %297 = vmatpush1.bf16.msra.mxu0 0
    %298 = vmatprep.subr.bf16.mxu0 0
    %299 = vmatpush1.bf16.msra.mxu0 0
    %300 = vmatprep.subr.bf16.mxu0 0
    %301 = vmatpush1.bf16.msra.mxu0 0
    %302 = vmatprep.subr.bf16.mxu0 0
    %303 = vmatpush1.bf16.msra.mxu0 0
    %304 = vmatprep.subr.bf16.mxu0 0
    %305 = vmatpush1.bf16.msra.mxu0 0
    %306 = vmatprep.subr.bf16.mxu0 0
    %307 = vmatpush1.bf16.msra.mxu0 0
    %308 = vmatprep.subr.bf16.mxu0 0
    %309 = vmatpush1.bf16.msra.mxu0 0
    %310 = vmatprep.mubr.bf16.mxu0 0
    %311 = vmatmul.mubr.bf16.gmra.mrb[0].mxu0 %v255
    %v312 = vpop.f32.mrb[0].mxu0
    %v313 = vadd.f32 %v227, %v312
    %v314 = vpop.f32.mrb[0].mxu0
    %v315 = vpop.f32.mrb[0].mxu0
    %v316 = vadd.f32 %v227, %v315
    %v317 = vpop.f32.mrb[0].mxu0
    %318 = vmatprep.mubr.bf16.mxu0 0
    %319 = vmatmul.mubr.bf16.gmra.mrb[0].mxu0 %v258
    %v320 = vpop.f32.mrb[0].mxu0
    %v321 = vadd.f32 %v227, %v320
    %v322 = vpop.f32.mrb[0].mxu0
    %v323 = vpop.f32.mrb[0].mxu0
    %v324 = vadd.f32 %v227, %v323
    %v325 = vpop.f32.mrb[0].mxu0
    %326 = vmatprep.mubr.bf16.mxu0 0
    %327 = vmatmul.mubr.bf16.gmra.mrb[0].mxu0 %v261
    %v328 = vpop.f32.mrb[0].mxu0
    %v329 = vadd.f32 %v227, %v328
    %v330 = vpop.f32.mrb[0].mxu0
    %v331 = vpop.f32.mrb[0].mxu0
    %v332 = vadd.f32 %v227, %v331
    %v333 = vpop.f32.mrb[0].mxu0
    %334 = vmatprep.mubr.bf16.mxu0 0
    %335 = vmatmul.mubr.bf16.gmra.mrb[0].mxu0 %v264
    %v336 = vpop.f32.mrb[0].mxu0
    %v337 = vadd.f32 %v227, %v336
    %v338 = vpop.f32.mrb[0].mxu0
    %v339 = vpop.f32.mrb[0].mxu0
    %v340 = vadd.f32 %v227, %v339
    %v341 = vpop.f32.mrb[0].mxu0
    %342 = vmatprep.mubr.bf16.mxu0 0
    %343 = vmatmul.mubr.bf16.gmra.mrb[0].mxu0 %v267
    %v344 = vpop.f32.mrb[0].mxu0
    %v345 = vadd.f32 %v227, %v344
    %v346 = vpop.f32.mrb[0].mxu0
    %v347 = vpop.f32.mrb[0].mxu0
    %v348 = vadd.f32 %v227, %v347
    %v349 = vpop.f32.mrb[0].mxu0
    %350 = vmatprep.mubr.bf16.mxu0 0
    %351 = vmatmul.mubr.bf16.gmra.mrb[0].mxu0 %v270
    %v352 = vpop.f32.mrb[0].mxu0
    %v353 = vadd.f32 %v227, %v352
    %v354 = vpop.f32.mrb[0].mxu0
    %v355 = vpop.f32.mrb[0].mxu0
    %v356 = vadd.f32 %v227, %v355
    %v357 = vpop.f32.mrb[0].mxu0
    %358 = vmatprep.mubr.bf16.mxu0 0
    %359 = vmatmul.mubr.bf16.gmra.mrb[0].mxu0 %v273
    %v360 = vpop.f32.mrb[0].mxu0
    %v361 = vadd.f32 %v227, %v360
    %v362 = vpop.f32.mrb[0].mxu0
    %v363 = vpop.f32.mrb[0].mxu0
    %v364 = vadd.f32 %v227, %v363
    %v365 = vpop.f32.mrb[0].mxu0
    %366 = vmatprep.mubr.bf16.mxu0 0
    %367 = vmatmul.mubr.bf16.gmra.mrb[0].mxu0 %v276
    %v368 = vpop.f32.mrb[0].mxu0
    %v369 = vadd.f32 %v227, %v368
    %v370 = vpop.f32.mrb[0].mxu0
    %v371 = vpop.f32.mrb[0].mxu0
    %v372 = vadd.f32 %v227, %v371
    %v373 = vpop.f32.mrb[0].mxu0
    %374 = vdwg.mxu0
    %v375 = vmax.f32 %v313, 0.0
    %v376 = vmax.f32 %v316, 0.0
    %v377 = vmax.f32 %v321, 0.0
    %v378 = vmax.f32 %v324, 0.0
    %v379 = vmax.f32 %v329, 0.0
    %v380 = vmax.f32 %v332, 0.0
    %v381 = vmax.f32 %v337, 0.0
    %v382 = vmax.f32 %v340, 0.0
    %v383 = vmax.f32 %v345, 0.0
    %v384 = vmax.f32 %v348, 0.0
    %v385 = vmax.f32 %v353, 0.0
    %v386 = vmax.f32 %v356, 0.0
    %v387 = vmax.f32 %v361, 0.0
    %v388 = vmax.f32 %v364, 0.0
    %v389 = vmax.f32 %v369, 0.0
    %v390 = vmax.f32 %v372, 0.0
    %v391 = vpack.c.bf16 %v376, %v375
    %v392 = vpack.c.bf16 %v378, %v377
    %v393 = vpack.c.bf16 %v380, %v379
    %v394 = vpack.c.bf16 %v382, %v381
    %v395 = vpack.c.bf16 %v384, %v383
    %v396 = vpack.c.bf16 %v386, %v385
    %v397 = vpack.c.bf16 %v388, %v387
    %v398 = vpack.c.bf16 %v390, %v389
    %v399 = vld [vmem:[%s5] sm:$0xf]
    %v401 = vsel %vm253, %v399, 0
    %v404 = vsel %vm253, %v391, 0
    %v407 = vsel %vm253, %v392, 0
    %v410 = vsel %vm253, %v393, 0
    %v413 = vsel %vm253, %v394, 0
    %v416 = vsel %vm253, %v395, 0
    %v419 = vsel %vm253, %v396, 0
    %v422 = vsel %vm253, %v397, 0
    %v425 = vsel %vm253, %v398, 0
    %427 = vmatprep.subr.bf16.mxu0 0
    %428 = vmatpush1.bf16.xpose.msra.mxu0 %v404
    %429 = vmatprep.subr.bf16.mxu0 0
    %430 = vmatpush1.bf16.xpose.msra.mxu0 %v407
    %431 = vmatprep.subr.bf16.mxu0 0
    %432 = vmatpush1.bf16.xpose.msra.mxu0 %v410
    %433 = vmatprep.subr.bf16.mxu0 0
    %434 = vmatpush1.bf16.xpose.msra.mxu0 %v413
    %435 = vmatprep.subr.bf16.mxu0 0
    %436 = vmatpush1.bf16.xpose.msra.mxu0 %v416
    %437 = vmatprep.subr.bf16.mxu0 0
    %438 = vmatpush1.bf16.xpose.msra.mxu0 %v419
    %439 = vmatprep.subr.bf16.mxu0 0
    %440 = vmatpush1.bf16.xpose.msra.mxu0 %v422
    %441 = vmatprep.subr.bf16.mxu0 0
    %442 = vmatpush1.bf16.xpose.msra.mxu0 %v425
    %443 = vmatprep.subr.bf16.mxu0 0
    %444 = vmatpush1.bf16.xpose.msra.mxu0 0
    %445 = vmatprep.subr.bf16.mxu0 0
    %446 = vmatpush1.bf16.xpose.msra.mxu0 0
    %447 = vmatprep.subr.bf16.mxu0 0
    %448 = vmatpush1.bf16.xpose.msra.mxu0 0
    %449 = vmatprep.subr.bf16.mxu0 0
    %450 = vmatpush1.bf16.xpose.msra.mxu0 0
    %451 = vmatprep.subr.bf16.mxu0 0
    %452 = vmatpush1.bf16.xpose.msra.mxu0 0
    %453 = vmatprep.subr.bf16.mxu0 0
    %454 = vmatpush1.bf16.xpose.msra.mxu0 0
    %455 = vmatprep.subr.bf16.mxu0 0
    %456 = vmatpush1.bf16.xpose.msra.mxu0 0
    %457 = vmatprep.subr.bf16.mxu0 0
    %458 = vmatpush1.bf16.xpose.msra.mxu0 0
    %459 = vmatprep.mubr.bf16.mxu0 0
    %460 = vmatmul.mubr.bf16.gmra.mrb[0].mxu0 %v401
    %v461 = vpop.f32.mrb[0].mxu0
    %v462 = vadd.f32 0.0, %v461
    %v463 = vpop.f32.mrb[0].mxu0
    %v464 = vpop.f32.mrb[0].mxu0
    %v465 = vpop.f32.mrb[0].mxu0
    %466 = vdwg.mxu0
    %s467 = sld [smem:[#allocation2]]
    %v468 = vstv %s467
    %v469 = vadd.f32 %v462, %v468
    %470 = vst [vmem:[#allocation3] sm:$0x1] %v469
    // Predicated region
    $region30: #{tpu_custom_call.1} parent=1 // pred_check
      _
    $region31: #{tpu_custom_call.1} parent=1 // pred_check_branch
      %472 = sbr.rel (0) target = $region33
    $region32: #{tpu_custom_call.1} parent=1 // pred_region
      %s474 = ssub.s32 16, 16
      %475 = vsyncadd [#allocation4], %s474
      %s477 = sshll.u32 [#allocation3], 4
      %s478 = int_to_ptr.vmem [resolvable:$true] %s477
      %480 = dma.vmem_to_hbm [thread:$0]  %s478, 16, %s7, [#allocation4]
    $region33: #{tpu_custom_call.1} parent=1 // pred_fallthru
      _
    // Predicated region
    $region34: #{tpu_custom_call.1} parent=1 // pred_check
      _
    $region35: #{tpu_custom_call.1} parent=1 // pred_check_branch
      %482 = sbr.rel (0) target = $region37
    $region36: #{tpu_custom_call.1} parent=1 // pred_region
      %483 = dma.done [#allocation4], 16
    $region37: #{tpu_custom_call.1} parent=1 // pred_fallthru
      _
    %484 = vsyncpa [#allocation4], 1

</llo_original>
